<compile_context>
chip_gen: v6e
topology: v6e:2x2x1
jax: 0.10.0
libtpu: 0.0.40
codegen_flags: <defaults>
</compile_context>

<pallas_src>
import functools

import jax
import jax.numpy as jnp
from jax.experimental import pallas as pl
from jax.experimental.pallas import tpu as pltpu

_COS_EPS = 1e-8      # PyTorch F.cosine_similarity default eps
_CLAMP_MIN = 1e-6    # .clamp(min=1e-06)


def _rank_loss_kernel(nl_pos_ref, nl_neg_ref, code_pos_ref, out_ref, *, margin):
    """One batch tile: write per-row clamp(margin - cos_pp + cos_np) to out."""
    a = nl_pos_ref[...].astype(jnp.float32)    # (TB, D) nl_vec_pos
    b = nl_neg_ref[...].astype(jnp.float32)    # (TB, D) nl_vec_neg
    c = code_pos_ref[...].astype(jnp.float32)  # (TB, D) code_vec_pos

    # Row-wise reductions over the lane axis, kept (TB, 1) keepdims so the
    # layout stays sublane-major and the reduce runs on the XLU.
    dot_pp = jnp.sum(a * c, axis=-1, keepdims=True)
    dot_np = jnp.sum(b * c, axis=-1, keepdims=True)
    ssq_a = jnp.sum(a * a, axis=-1, keepdims=True)
    ssq_b = jnp.sum(b * b, axis=-1, keepdims=True)
    ssq_c = jnp.sum(c * c, axis=-1, keepdims=True)

    # cos = dot * rsqrt(max(ssq_x * ssq_y, eps^2))
    #     == dot / max(norm_x * norm_y, eps); rsqrt uses the EUP slot.
    eps_sq = jnp.float32(_COS_EPS * _COS_EPS)
    cos_pp = dot_pp * jax.lax.rsqrt(jnp.maximum(ssq_a * ssq_c, eps_sq))
    cos_np = dot_np * jax.lax.rsqrt(jnp.maximum(ssq_b * ssq_c, eps_sq))

    out_ref[...] = jnp.maximum(jnp.float32(margin) - cos_pp + cos_np,
                               jnp.float32(_CLAMP_MIN))      # (TB, 1)


def rank_loss(nl_vec_pos, nl_vec_neg, code_vec_pos, code_vec_neg, margin,
              *, block_rows=None):
    """Pallas implementation of RankLoss(margin).forward(...). Returns scalar f32."""
    del code_vec_neg  # unused by the PyTorch forward pass
    B, D = nl_vec_pos.shape

    itemsize = jnp.dtype(nl_vec_pos.dtype).itemsize
    # Sublane granularity for the second-to-last block dim: 8 for f32,
    # 16 for bf16, 32 for 8-bit types (packed layouts).
    sub = max(8, 32 // itemsize)

    # Per-generation VMEM budget for the double-buffered input tiles:
    # ~40 MiB on 128-MiB parts (v5e/v6e), ~21 MiB on v7x (64 MiB physical).
    try:
        vmem_cap = int(pltpu.get_tpu_info().vmem_capacity_bytes)
    except Exception:
        vmem_cap = 64 * 1024 * 1024   # conservative fallback (v7x per-TC size)
    budget_bytes = min(vmem_cap // 3, 40 * 1024 * 1024)

    if block_rows is None:
        # 3 streamed inputs x 2 pipeline buffers x TB x D x itemsize.
        cap = budget_bytes // (2 * 3 * D * itemsize)
        block_rows = max(sub, (cap // sub) * sub)
    if B <= block_rows:
        block_rows = B                 # full-extent batch block (always legal)
    else:
        assert block_rows % sub == 0, f"block_rows must be a multiple of {sub}"

    n_blocks = pl.cdiv(B, block_rows)
    padded_rows = n_blocks * block_rows   # output padded so no OOB writes

    vmem_use = 2 * 3 * block_rows * D * itemsize + 2 * block_rows * 4
    vmem_limit = int(min(vmem_cap, max(vmem_use + (8 << 20), 32 << 20)))

    # margin is a static Python float on the module -> bake it in.
    kernel = functools.partial(_rank_loss_kernel, margin=float(margin))

    row_spec = pl.BlockSpec((block_rows, D), lambda i: (i, 0))
    out_spec = pl.BlockSpec((block_rows, 1), lambda i: (i, 0))

    per_row = pl.pallas_call(
        kernel,
        out_shape=jax.ShapeDtypeStruct((padded_rows, 1), jnp.float32),
        grid=(n_blocks,),
        in_specs=[row_spec, row_spec, row_spec],
        out_specs=out_spec,
        compiler_params=pltpu.CompilerParams(
            dimension_semantics=("parallel",),   # no carried state -> megacore OK
            vmem_limit_bytes=vmem_limit),
    )(nl_vec_pos, nl_vec_neg, code_vec_pos)

    # Pad rows (if any) hold garbage-derived values from OOB edge reads; they
    # are sliced away here, never summed.
    return jnp.sum(per_row[:B, 0]) / B


def rank_loss_ref(nl_vec_pos, nl_vec_neg, code_vec_pos, code_vec_neg, margin):
    """Pure-JAX reference mirroring the PyTorch forward (computed in f32)."""
    del code_vec_neg
    nl_vec_pos = nl_vec_pos.astype(jnp.float32)
    nl_vec_neg = nl_vec_neg.astype(jnp.float32)
    code_vec_pos = code_vec_pos.astype(jnp.float32)

    def cos(x, y):
        num = jnp.sum(x * y, axis=1)
        den = jnp.maximum(
            jnp.linalg.norm(x, axis=1) * jnp.linalg.norm(y, axis=1), _COS_EPS
        )
        return num / den

    val = margin - cos(nl_vec_pos, code_vec_pos) + cos(nl_vec_neg, code_vec_pos)
    return jnp.mean(jnp.maximum(val, _CLAMP_MIN))


if __name__ == "__main__":
    margin = 0.5

    # Case 1: small single-tile path.
    B, D = 8, 128
    k1, k2, k3, k4 = jax.random.split(jax.random.PRNGKey(0), 4)
    nl_vec_pos = jax.random.normal(k1, (B, D), dtype=jnp.float32)
    nl_vec_neg = jax.random.normal(k2, (B, D), dtype=jnp.float32)
    code_vec_pos = jax.random.normal(k3, (B, D), dtype=jnp.float32)
    code_vec_neg = jax.random.normal(k4, (B, D), dtype=jnp.float32)  # unused by fwd

    loss = rank_loss(nl_vec_pos, nl_vec_neg, code_vec_pos, code_vec_neg, margin)
    jax.block_until_ready(loss)
    ref = rank_loss_ref(nl_vec_pos, nl_vec_neg, code_vec_pos, code_vec_neg, margin)
    assert jnp.allclose(loss, ref, rtol=1e-5, atol=1e-5), (loss, ref)

    # Case 2: multi-tile path with a partial (padded) last tile: B=40, TB=16.
    B2 = 40
    j1, j2, j3, j4 = jax.random.split(jax.random.PRNGKey(1), 4)
    nl_pos2 = jax.random.normal(j1, (B2, D), dtype=jnp.float32)
    nl_neg2 = jax.random.normal(j2, (B2, D), dtype=jnp.float32)
    code_pos2 = jax.random.normal(j3, (B2, D), dtype=jnp.float32)
    code_neg2 = jax.random.normal(j4, (B2, D), dtype=jnp.float32)

    loss2 = rank_loss(nl_pos2, nl_neg2, code_pos2, code_neg2, margin, block_rows=16)
    jax.block_until_ready(loss2)
    ref2 = rank_loss_ref(nl_pos2, nl_neg2, code_pos2, code_neg2, margin)
    assert jnp.allclose(loss2, ref2, rtol=1e-5, atol=1e-5), (loss2, ref2)

    # Case 3: bf16-in-HBM path (kernel upcasts to f32 internally).
    B3, D3 = 64, 256
    m1, m2, m3, m4 = jax.random.split(jax.random.PRNGKey(2), 4)
    nl_pos3 = jax.random.normal(m1, (B3, D3), dtype=jnp.bfloat16)
    nl_neg3 = jax.random.normal(m2, (B3, D3), dtype=jnp.bfloat16)
    code_pos3 = jax.random.normal(m3, (B3, D3), dtype=jnp.bfloat16)
    code_neg3 = jax.random.normal(m4, (B3, D3), dtype=jnp.bfloat16)

    loss3 = rank_loss(nl_pos3, nl_neg3, code_pos3, code_neg3, margin)
    jax.block_until_ready(loss3)
    ref3 = rank_loss_ref(nl_pos3, nl_neg3, code_pos3, code_neg3, margin)
    assert jnp.allclose(loss3, ref3, rtol=1e-5, atol=1e-5), (loss3, ref3)

    print("KERNEL_OK")
</pallas_src>

<mosaic_0001>
module attributes {stable_mosaic.version = 11 : i64} {
  func.func @_rank_loss_kernel(%arg0: i32, %arg1: memref<8x128xf32, #tpu.memory_space<vmem>>, %arg2: memref<8x128xf32, #tpu.memory_space<vmem>>, %arg3: memref<8x128xf32, #tpu.memory_space<vmem>>, %arg4: memref<8x1xf32, #tpu.memory_space<vmem>>) attributes {dimension_semantics = [#tpu.dimension_semantics<parallel>], iteration_bounds = array<i64: 1>, scalar_prefetch = 0 : i64, scratch_operands = 0 : i64, tpu.core_type = #tpu.core_type<tc>, window_params = [{transform_indices = @transform_0, window_bounds = array<i64: 8, 128>}, {transform_indices = @transform_1, window_bounds = array<i64: 8, 128>}, {transform_indices = @transform_2, window_bounds = array<i64: 8, 128>}, {transform_indices = @transform_3, window_bounds = array<i64: 8, 1>}]} {
    %c0 = arith.constant 0 : index
    %c0_0 = arith.constant 0 : index
    %0 = vector.load %arg1[%c0, %c0_0] : memref<8x128xf32, #tpu.memory_space<vmem>>, vector<8x128xf32>
    %c0_1 = arith.constant 0 : index
    %c0_2 = arith.constant 0 : index
    %1 = vector.load %arg2[%c0_1, %c0_2] : memref<8x128xf32, #tpu.memory_space<vmem>>, vector<8x128xf32>
    %c0_3 = arith.constant 0 : index
    %c0_4 = arith.constant 0 : index
    %2 = vector.load %arg3[%c0_3, %c0_4] : memref<8x128xf32, #tpu.memory_space<vmem>>, vector<8x128xf32>
    %3 = arith.mulf %0, %2 : vector<8x128xf32>
    %cst = arith.constant dense<0.000000e+00> : vector<8xf32>
    %4 = vector.multi_reduction <add>, %3, %cst [1] : vector<8x128xf32> to vector<8xf32>
    %5 = vector.shape_cast %4 : vector<8xf32> to vector<8x1xf32>
    %6 = arith.mulf %1, %2 : vector<8x128xf32>
    %cst_5 = arith.constant dense<0.000000e+00> : vector<8xf32>
    %7 = vector.multi_reduction <add>, %6, %cst_5 [1] : vector<8x128xf32> to vector<8xf32>
    %8 = vector.shape_cast %7 : vector<8xf32> to vector<8x1xf32>
    %9 = arith.mulf %0, %0 : vector<8x128xf32>
    %cst_6 = arith.constant dense<0.000000e+00> : vector<8xf32>
    %10 = vector.multi_reduction <add>, %9, %cst_6 [1] : vector<8x128xf32> to vector<8xf32>
    %11 = vector.shape_cast %10 : vector<8xf32> to vector<8x1xf32>
    %12 = arith.mulf %1, %1 : vector<8x128xf32>
    %cst_7 = arith.constant dense<0.000000e+00> : vector<8xf32>
    %13 = vector.multi_reduction <add>, %12, %cst_7 [1] : vector<8x128xf32> to vector<8xf32>
    %14 = vector.shape_cast %13 : vector<8xf32> to vector<8x1xf32>
    %15 = arith.mulf %2, %2 : vector<8x128xf32>
    %cst_8 = arith.constant dense<0.000000e+00> : vector<8xf32>
    %16 = vector.multi_reduction <add>, %15, %cst_8 [1] : vector<8x128xf32> to vector<8xf32>
    %17 = vector.shape_cast %16 : vector<8xf32> to vector<8x1xf32>
    %18 = arith.mulf %11, %17 : vector<8x1xf32>
    %cst_9 = arith.constant 1.000000e-16 : f32
    %19 = vector.broadcast %cst_9 : f32 to vector<8x1xf32>
    %20 = arith.maximumf %18, %19 : vector<8x1xf32>
    %21 = math.rsqrt %20 : vector<8x1xf32>
    %22 = arith.mulf %5, %21 : vector<8x1xf32>
    %23 = arith.mulf %14, %17 : vector<8x1xf32>
    %cst_10 = arith.constant 1.000000e-16 : f32
    %24 = vector.broadcast %cst_10 : f32 to vector<8x1xf32>
    %25 = arith.maximumf %23, %24 : vector<8x1xf32>
    %26 = math.rsqrt %25 : vector<8x1xf32>
    %27 = arith.mulf %8, %26 : vector<8x1xf32>
    %cst_11 = arith.constant 5.000000e-01 : f32
    %28 = vector.broadcast %cst_11 : f32 to vector<8x1xf32>
    %29 = arith.subf %28, %22 : vector<8x1xf32>
    %30 = arith.addf %29, %27 : vector<8x1xf32>
    %cst_12 = arith.constant 9.99999997E-7 : f32
    %31 = vector.broadcast %cst_12 : f32 to vector<8x1xf32>
    %32 = arith.maximumf %30, %31 : vector<8x1xf32>
    %c0_13 = arith.constant 0 : index
    %c0_14 = arith.constant 0 : index
    %33 = vector.load %arg4[%c0_13, %c0_14] : memref<8x1xf32, #tpu.memory_space<vmem>>, vector<8x1xf32>
    tpu.vector_store %arg4[%c0_13, %c0_14], %32 {strides = array<i32>} : memref<8x1xf32, #tpu.memory_space<vmem>>, vector<8x1xf32>,
    return
  }
  func.func @transform_0(%arg0: i32) -> (i32, i32) {
    %c0_i32 = arith.constant 0 : i32
    %c0_i32_0 = arith.constant 0 : i32
    return %arg0, %c0_i32 : i32, i32
  }
  func.func @transform_1(%arg0: i32) -> (i32, i32) {
    %c0_i32 = arith.constant 0 : i32
    %c0_i32_0 = arith.constant 0 : i32
    return %arg0, %c0_i32 : i32, i32
  }
  func.func @transform_2(%arg0: i32) -> (i32, i32) {
    %c0_i32 = arith.constant 0 : i32
    %c0_i32_0 = arith.constant 0 : i32
    return %arg0, %c0_i32 : i32, i32
  }
  func.func @transform_3(%arg0: i32) -> (i32, i32) {
    %c0_i32 = arith.constant 0 : i32
    %c0_i32_0 = arith.constant 0 : i32
    return %arg0, %c0_i32 : i32, i32
  }
}

</mosaic_0001>

<llo_original>
// kernel: tpu_custom_call.1
$region0: #{tpu_custom_call.1}
  #allocation0 [shape = 'u32[]', space=smem, size = 0x4, offset = 0x4, fixed_abs, tag = 'smem constant byte address 0x4 - core index']
  #allocation1 [shape = 'u32[144,128]{1,0:T(1,128)}', space=vmem, size = 0x12000, scoped, tag = 'internal scratch']
  %s0 = inlined_call_operand.hbm [shape: f32[8,128], index: 0, kind: input, shape index: {}]
  %s1 = inlined_call_operand.hbm [shape: f32[8,128], index: 1, kind: input, shape index: {}]
  %s2 = inlined_call_operand.hbm [shape: f32[8,128], index: 2, kind: input, shape index: {}]
  %s3 = inlined_call_operand.vmem [shape: f32[8,1], index: 3, kind: output, shape index: {}]
  %s4 = sld [smem:[#allocation0]]
  $region34: #{tpu_custom_call.1} parent=0
    _
  %s6 = ssub.s32 1, %s4
  %s7 = scalar_select 0, %s6, %s4
  $region1: #{tpu_custom_call.1} parent=0
    #allocation2 [shape = 'u8[4096]{0}', space=vmem, size = 0x1000, scoped, tag = 'input window, operand 0, single buffered']
    #allocation3 [shape = 's32[1]{0}', space=sflag, size = 0x4, scoped, tag = 'scoped memory for tpu_custom_call.1']
    #allocation4 [shape = 'u8[4096]{0}', space=vmem, size = 0x1000, scoped, tag = 'input window, operand 1, single buffered']
    #allocation5 [shape = 's32[1]{0}', space=sflag, size = 0x4, scoped, tag = 'scoped memory for tpu_custom_call.1']
    #allocation6 [shape = 'u8[4096]{0}', space=vmem, size = 0x1000, scoped, tag = 'input window, operand 2, single buffered']
    %8 = vsyncpa [#allocation3], 0
    %9 = vsyncpa [#allocation5], 0
    // Predicated region
    $region2: #{tpu_custom_call.1} parent=1 // pred_check
      _
    $region3: #{tpu_custom_call.1} parent=1 // pred_check_branch
      %11 = sbr.rel (0) target = $region5
    $region4: #{tpu_custom_call.1} parent=1 // pred_region
      %s13 = ssub.s32 128, 128
      %14 = vsyncadd [#allocation3], %s13
      %s16 = sshll.u32 [#allocation2], 4
      %s17 = int_to_ptr.vmem [resolvable:$true] %s16
      %19 = dma.hbm_to_vmem [thread:$0]  %s0, 128, %s17, [#allocation3]
    $region5: #{tpu_custom_call.1} parent=1 // pred_fallthru
      _
    // Predicated region
    $region6: #{tpu_custom_call.1} parent=1 // pred_check
      _
    $region7: #{tpu_custom_call.1} parent=1 // pred_check_branch
      %21 = sbr.rel (0) target = $region9
    $region8: #{tpu_custom_call.1} parent=1 // pred_region
      %s23 = ssub.s32 128, 128
      %24 = vsyncadd [#allocation5], %s23
      %s26 = sshll.u32 [#allocation4], 4
      %s27 = int_to_ptr.vmem [resolvable:$true] %s26
      %29 = dma.hbm_to_vmem [thread:$0]  %s1, 128, %s27, [#allocation5]
    $region9: #{tpu_custom_call.1} parent=1 // pred_fallthru
      _
    // Predicated region
    $region10: #{tpu_custom_call.1} parent=1 // pred_check
      _
    $region11: #{tpu_custom_call.1} parent=1 // pred_check_branch
      %31 = sbr.rel (0) target = $region13
    $region12: #{tpu_custom_call.1} parent=1 // pred_region
      %s33 = ssub.s32 128, 128
      %34 = vsyncadd [#allocation5], %s33
      %s36 = sshll.u32 [#allocation6], 4
      %s37 = int_to_ptr.vmem [resolvable:$true] %s36
      %39 = dma.hbm_to_vmem [thread:$0]  %s2, 128, %s37, [#allocation5]
    $region13: #{tpu_custom_call.1} parent=1 // pred_fallthru
      _
    // Predicated region
    $region14: #{tpu_custom_call.1} parent=1 // pred_check
      _
    $region15: #{tpu_custom_call.1} parent=1 // pred_check_branch
      %41 = sbr.rel (0) target = $region17
    $region16: #{tpu_custom_call.1} parent=1 // pred_region
      %42 = dma.done [#allocation3], 128
    $region17: #{tpu_custom_call.1} parent=1 // pred_fallthru
      _
    // Predicated region
    $region18: #{tpu_custom_call.1} parent=1 // pred_check
      _
    $region19: #{tpu_custom_call.1} parent=1 // pred_check_branch
      %44 = sbr.rel (0) target = $region21
    $region20: #{tpu_custom_call.1} parent=1 // pred_region
      %45 = dma.done [#allocation5], 128
    $region21: #{tpu_custom_call.1} parent=1 // pred_fallthru
      _
    // Predicated region
    $region22: #{tpu_custom_call.1} parent=1 // pred_check
      _
    $region23: #{tpu_custom_call.1} parent=1 // pred_check_branch
      %47 = sbr.rel (0) target = $region25
    $region24: #{tpu_custom_call.1} parent=1 // pred_region
      %48 = dma.done [#allocation5], 128
    $region25: #{tpu_custom_call.1} parent=1 // pred_fallthru
      _
    %v49 = vld [vmem:[#allocation2] sm:$0xff]
    %v50 = vld [vmem:[#allocation4] sm:$0xff]
    %v51 = vld [vmem:[#allocation6] sm:$0xff]
    %v52 = vmul.f32 %v49, %v51
    %53 = vadd.xlane.f32.xlu0 %v52
    %v54 = vpop.xlane.xlu0 %53
    %v55 = vmul.f32 %v50, %v51
    %56 = vadd.xlane.f32.xlu0 %v55
    %v57 = vpop.xlane.xlu0 %56
    %v58 = vmul.f32 %v49, %v49
    %59 = vadd.xlane.f32.xlu0 %v58
    %v60 = vpop.xlane.xlu0 %59
    %v61 = vmul.f32 %v50, %v50
    %62 = vadd.xlane.f32.xlu0 %v61
    %v63 = vpop.xlane.xlu0 %62
    %v64 = vmul.f32 %v51, %v51
    %65 = vadd.xlane.f32.xlu0 %v64
    %v66 = vpop.xlane.xlu0 %65
    %v67 = vmul.f32 %v60, %v66
    %v68 = vmax.f32 %v67, 1e-16
    %v69 = vrsqrt.pop %v68
    %v70 = vmul.f32 %v54, %v69
    %v71 = vmul.f32 %v63, %v66
    %v72 = vmax.f32 %v71, 1e-16
    %v73 = vrsqrt.pop %v72
    %v74 = vmul.f32 %v57, %v73
    %v75 = vsub.f32 0.5, %v70
    %v76 = vadd.f32 %v75, %v74
    %v77 = vmax.f32 %v76, 1e-06
    %vm78 = vcmask 7168
    %79 = vst.msk [vmem:[%s3] sm:$0xff] %vm78, %v77
    // Predicated region
    $region26: #{tpu_custom_call.1} parent=1 // pred_check
      _
    $region27: #{tpu_custom_call.1} parent=1 // pred_check_branch
      %81 = sbr.rel (0) target = $region29
    $region28: #{tpu_custom_call.1} parent=1 // pred_region
      _
    $region29: #{tpu_custom_call.1} parent=1 // pred_fallthru
      _
    // Predicated region
    $region30: #{tpu_custom_call.1} parent=1 // pred_check
      _
    $region31: #{tpu_custom_call.1} parent=1 // pred_check_branch
      %83 = sbr.rel (0) target = $region33
    $region32: #{tpu_custom_call.1} parent=1 // pred_region
      _
    $region33: #{tpu_custom_call.1} parent=1 // pred_fallthru
      _
    %84 = vsyncpa [#allocation3], 1
    %85 = vsyncpa [#allocation5], 1

</llo_original>
